<compile_context>
chip_gen: v5e
topology: v5e:2x2
jax: 0.10.0
libtpu: 0.0.40
codegen_flags: <defaults>
</compile_context>

<pallas_src>
import jax
import jax.numpy as jnp
from jax.experimental import pallas as pl
from jax.experimental.pallas import tpu as pltpu

INPUT_DIM = 3 + 1      # 4, as in the reference script
HIDDEN_DIM = 64
OUTPUT_DIM = 8


def _round_up(n, m):
    return ((n + m - 1) // m) * m


def mlp_kernel(x_ref, w1_ref, b1_ref, w2_ref, b2_ref, o_ref):
    x = x_ref[...]            # [tile, D_in]
    w1 = w1_ref[...]          # [D_in, D_hid]
    d_in = x.shape[1]         # static (4)

    # fc1 on the VPU: contraction dim is tiny (4) -> unrolled broadcast MACs.
    # Bias folded into the first MAC to save one VPU add.
    h = x[:, 0:1] * w1[0:1, :] + b1_ref[...]
    for k in range(1, d_in):  # static Python unroll, d_in == 4
        h = h + x[:, k:k + 1] * w1[k:k + 1, :]
    h = jnp.maximum(h, 0.0)                        # ReLU

    # fc2 on the MXU: K=64, N=8 (narrow store is masked, but writeback bytes
    # drop ~16x vs. a 128-lane zero-padded output).
    y = jnp.dot(h, w2_ref[...], preferred_element_type=jnp.float32) + b2_ref[...]
    o_ref[...] = y.astype(o_ref.dtype)


def multiclass_forward(x, w1, b1, w2, b2, *, batch_tile=2048):
    B, D_in = x.shape
    D_hid = w1.shape[1]
    D_out = w2.shape[1]

    # ---- tile selection (memory/overhead-bound: big tiles, few grid steps) --
    B8 = _round_up(max(B, 1), 8)
    tile = min(_round_up(batch_tile, 8), B8)
    # Keep at least 2 grid steps when the batch allows it so the "parallel"
    # grid axis can shard across both TensorCores on v7x.
    if B8 >= 16:
        tile = min(tile, _round_up(pl.cdiv(B8, 2), 8))
    B_pad = _round_up(B, tile)
    if B_pad != B:
        # Only the ragged tail is padded (tile already clipped to ~B); this is
        # a minor cost relative to the streamed x/out traffic.
        x = jnp.pad(x, ((0, B_pad - B), (0, 0)))

    grid = (B_pad // tile,)

    out = pl.pallas_call(
        mlp_kernel,
        out_shape=jax.ShapeDtypeStruct((B_pad, D_out), jnp.float32),
        grid_spec=pltpu.PrefetchScalarGridSpec(
            num_scalar_prefetch=0,
            grid=grid,
            in_specs=[
                # x: tiled over batch; feature dim == full array dim (4).
                pl.BlockSpec((tile, D_in), lambda i: (i, 0)),
                # Parameters: constant block index -> stay resident in VMEM.
                pl.BlockSpec((D_in, D_hid), lambda i: (0, 0)),
                pl.BlockSpec((1, D_hid), lambda i: (0, 0)),
                pl.BlockSpec((D_hid, D_out), lambda i: (0, 0)),
                pl.BlockSpec((1, D_out), lambda i: (0, 0)),
            ],
            out_specs=pl.BlockSpec((tile, D_out), lambda i: (i, 0)),
        ),
        compiler_params=pltpu.CompilerParams(
            dimension_semantics=("parallel",),   # shards grid across TCs on v7x
        ),
    )(x, w1, b1, w2, b2)

    # Drop batch padding (no column slice needed anymore).
    return out[:B] if B_pad != B else out


def init_params(key, input_dim=INPUT_DIM, hidden_dim=HIDDEN_DIM, output_dim=OUTPUT_DIM):
    """Deterministic init matching PyTorch nn.Linear's default:
    U(-1/sqrt(fan_in), 1/sqrt(fan_in)) for both weight and bias."""
    k1, k2, k3, k4 = jax.random.split(key, 4)
    bound1 = 1.0 / jnp.sqrt(jnp.float32(input_dim))
    bound2 = 1.0 / jnp.sqrt(jnp.float32(hidden_dim))
    # Stored as [in, out] (kernel layout); equivalent to PyTorch W.T.
    w1 = jax.random.uniform(k1, (input_dim, hidden_dim), jnp.float32, -bound1, bound1)
    b1 = jax.random.uniform(k2, (1, hidden_dim), jnp.float32, -bound1, bound1)
    w2 = jax.random.uniform(k3, (hidden_dim, output_dim), jnp.float32, -bound2, bound2)
    b2 = jax.random.uniform(k4, (1, output_dim), jnp.float32, -bound2, bound2)
    return w1, b1, w2, b2


def reference_forward(x, w1, b1, w2, b2):
    h = jnp.maximum(x @ w1 + b1, 0.0)
    return h @ w2 + b2


if __name__ == "__main__":
    key = jax.random.PRNGKey(0)
    kx, kp = jax.random.split(key)

    w1, b1, w2, b2 = init_params(kp)

    # Small batch: exercises the tile-clipping + 2-step grid path.
    B = 16
    x = jax.random.normal(kx, (B, INPUT_DIM), dtype=jnp.float32)
    out = jax.block_until_ready(multiclass_forward(x, w1, b1, w2, b2))
    ref = reference_forward(x, w1, b1, w2, b2)
    assert out.shape == (B, OUTPUT_DIM)
    assert jnp.allclose(out, ref, atol=1e-5, rtol=1e-5)

    # Non-multiple batch: exercises padding + multi-step grid with a small tile.
    B2 = 100
    x2 = jax.random.normal(jax.random.PRNGKey(1), (B2, INPUT_DIM), dtype=jnp.float32)
    out2 = jax.block_until_ready(multiclass_forward(x2, w1, b1, w2, b2, batch_tile=32))
    ref2 = reference_forward(x2, w1, b1, w2, b2)
    assert out2.shape == (B2, OUTPUT_DIM)
    assert jnp.allclose(out2, ref2, atol=1e-5, rtol=1e-5)

    print("KERNEL_OK")
</pallas_src>

<mosaic_0001>
module attributes {stable_mosaic.version = 11 : i64} {
  func.func @mlp_kernel(%arg0: i32, %arg1: memref<8x4xf32, #tpu.memory_space<vmem>>, %arg2: memref<4x64xf32, #tpu.memory_space<vmem>>, %arg3: memref<1x64xf32, #tpu.memory_space<vmem>>, %arg4: memref<64x8xf32, #tpu.memory_space<vmem>>, %arg5: memref<1x8xf32, #tpu.memory_space<vmem>>, %arg6: memref<8x8xf32, #tpu.memory_space<vmem>>) attributes {dimension_semantics = [#tpu.dimension_semantics<parallel>], iteration_bounds = array<i64: 2>, scalar_prefetch = 0 : i64, scratch_operands = 0 : i64, tpu.core_type = #tpu.core_type<tc>, window_params = [{transform_indices = @transform_0, window_bounds = array<i64: 8, 4>}, {pipeline_mode = #tpu.pipeline_mode<synchronous>, transform_indices = @transform_1, window_bounds = array<i64: 4, 64>}, {pipeline_mode = #tpu.pipeline_mode<synchronous>, transform_indices = @transform_2, window_bounds = array<i64: 1, 64>}, {pipeline_mode = #tpu.pipeline_mode<synchronous>, transform_indices = @transform_3, window_bounds = array<i64: 64, 8>}, {pipeline_mode = #tpu.pipeline_mode<synchronous>, transform_indices = @transform_4, window_bounds = array<i64: 1, 8>}, {transform_indices = @transform_5, window_bounds = array<i64: 8, 8>}]} {
    %c0 = arith.constant 0 : index
    %c0_0 = arith.constant 0 : index
    %0 = vector.load %arg1[%c0, %c0_0] : memref<8x4xf32, #tpu.memory_space<vmem>>, vector<8x4xf32>
    %c0_1 = arith.constant 0 : index
    %c0_2 = arith.constant 0 : index
    %1 = vector.load %arg2[%c0_1, %c0_2] : memref<4x64xf32, #tpu.memory_space<vmem>>, vector<4x64xf32>
    %2 = vector.extract_strided_slice %0 {offsets = [0, 0], sizes = [8, 1], strides = [1, 1]} : vector<8x4xf32> to vector<8x1xf32>
    %3 = vector.extract_strided_slice %1 {offsets = [0, 0], sizes = [1, 64], strides = [1, 1]} : vector<4x64xf32> to vector<1x64xf32>
    %4 = vector.broadcast %2 : vector<8x1xf32> to vector<8x64xf32>
    %5 = vector.broadcast %3 : vector<1x64xf32> to vector<8x64xf32>
    %6 = arith.mulf %4, %5 : vector<8x64xf32>
    %c0_3 = arith.constant 0 : index
    %c0_4 = arith.constant 0 : index
    %7 = vector.load %arg3[%c0_3, %c0_4] : memref<1x64xf32, #tpu.memory_space<vmem>>, vector<1x64xf32>
    %8 = vector.broadcast %7 : vector<1x64xf32> to vector<8x64xf32>
    %9 = arith.addf %6, %8 : vector<8x64xf32>
    %10 = vector.extract_strided_slice %0 {offsets = [0, 1], sizes = [8, 1], strides = [1, 1]} : vector<8x4xf32> to vector<8x1xf32>
    %11 = vector.extract_strided_slice %1 {offsets = [1, 0], sizes = [1, 64], strides = [1, 1]} : vector<4x64xf32> to vector<1x64xf32>
    %12 = vector.broadcast %10 : vector<8x1xf32> to vector<8x64xf32>
    %13 = vector.broadcast %11 : vector<1x64xf32> to vector<8x64xf32>
    %14 = arith.mulf %12, %13 : vector<8x64xf32>
    %15 = arith.addf %9, %14 : vector<8x64xf32>
    %16 = vector.extract_strided_slice %0 {offsets = [0, 2], sizes = [8, 1], strides = [1, 1]} : vector<8x4xf32> to vector<8x1xf32>
    %17 = vector.extract_strided_slice %1 {offsets = [2, 0], sizes = [1, 64], strides = [1, 1]} : vector<4x64xf32> to vector<1x64xf32>
    %18 = vector.broadcast %16 : vector<8x1xf32> to vector<8x64xf32>
    %19 = vector.broadcast %17 : vector<1x64xf32> to vector<8x64xf32>
    %20 = arith.mulf %18, %19 : vector<8x64xf32>
    %21 = arith.addf %15, %20 : vector<8x64xf32>
    %22 = vector.extract_strided_slice %0 {offsets = [0, 3], sizes = [8, 1], strides = [1, 1]} : vector<8x4xf32> to vector<8x1xf32>
    %23 = vector.extract_strided_slice %1 {offsets = [3, 0], sizes = [1, 64], strides = [1, 1]} : vector<4x64xf32> to vector<1x64xf32>
    %24 = vector.broadcast %22 : vector<8x1xf32> to vector<8x64xf32>
    %25 = vector.broadcast %23 : vector<1x64xf32> to vector<8x64xf32>
    %26 = arith.mulf %24, %25 : vector<8x64xf32>
    %27 = arith.addf %21, %26 : vector<8x64xf32>
    %cst = arith.constant 0.000000e+00 : f32
    %28 = vector.broadcast %cst : f32 to vector<8x64xf32>
    %29 = arith.maximumf %27, %28 : vector<8x64xf32>
    %c0_5 = arith.constant 0 : index
    %c0_6 = arith.constant 0 : index
    %30 = vector.load %arg4[%c0_5, %c0_6] : memref<64x8xf32, #tpu.memory_space<vmem>>, vector<64x8xf32>
    %cst_7 = arith.constant dense<0.000000e+00> : vector<8x8xf32>
    %31 = tpu.matmul %29, %30, %cst_7 {dimension_numbers = #tpu.dot_dimension_numbers<[1], [0], [0], [1], [0, 0, 1, 1], [], []>} : vector<8x64xf32>, vector<64x8xf32>, vector<8x8xf32> -> vector<8x8xf32>
    %c0_8 = arith.constant 0 : index
    %c0_9 = arith.constant 0 : index
    %32 = vector.load %arg5[%c0_8, %c0_9] : memref<1x8xf32, #tpu.memory_space<vmem>>, vector<1x8xf32>
    %33 = vector.broadcast %32 : vector<1x8xf32> to vector<8x8xf32>
    %34 = arith.addf %31, %33 : vector<8x8xf32>
    %c0_10 = arith.constant 0 : index
    %c0_11 = arith.constant 0 : index
    %35 = vector.load %arg6[%c0_10, %c0_11] : memref<8x8xf32, #tpu.memory_space<vmem>>, vector<8x8xf32>
    tpu.vector_store %arg6[%c0_10, %c0_11], %34 {strides = array<i32>} : memref<8x8xf32, #tpu.memory_space<vmem>>, vector<8x8xf32>,
    return
  }
  func.func @transform_0(%arg0: i32) -> (i32, i32) {
    %c0_i32 = arith.constant 0 : i32
    %c0_i32_0 = arith.constant 0 : i32
    return %arg0, %c0_i32 : i32, i32
  }
  func.func @transform_1(%arg0: i32) -> (i32, i32) {
    %c0_i32 = arith.constant 0 : i32
    %c0_i32_0 = arith.constant 0 : i32
    %c0_i32_1 = arith.constant 0 : i32
    return %c0_i32, %c0_i32_0 : i32, i32
  }
  func.func @transform_2(%arg0: i32) -> (i32, i32) {
    %c0_i32 = arith.constant 0 : i32
    %c0_i32_0 = arith.constant 0 : i32
    %c0_i32_1 = arith.constant 0 : i32
    return %c0_i32, %c0_i32_0 : i32, i32
  }
  func.func @transform_3(%arg0: i32) -> (i32, i32) {
    %c0_i32 = arith.constant 0 : i32
    %c0_i32_0 = arith.constant 0 : i32
    %c0_i32_1 = arith.constant 0 : i32
    return %c0_i32, %c0_i32_0 : i32, i32
  }
  func.func @transform_4(%arg0: i32) -> (i32, i32) {
    %c0_i32 = arith.constant 0 : i32
    %c0_i32_0 = arith.constant 0 : i32
    %c0_i32_1 = arith.constant 0 : i32
    return %c0_i32, %c0_i32_0 : i32, i32
  }
  func.func @transform_5(%arg0: i32) -> (i32, i32) {
    %c0_i32 = arith.constant 0 : i32
    %c0_i32_0 = arith.constant 0 : i32
    return %arg0, %c0_i32 : i32, i32
  }
}

</mosaic_0001>

<llo_original>
// kernel: tpu_custom_call.1
$region0: #{tpu_custom_call.1}
  #allocation0 [shape = 'u32[]', space=smem, size = 0x4, offset = 0x4, fixed_abs, tag = 'smem constant byte address 0x4 - core index']
  #allocation1 [shape = 'u32[72,128]{1,0:T(1,128)}', space=vmem, size = 0x9000, scoped, tag = 'internal scratch']
  %s0 = inlined_call_operand.vmem [shape: f32[16,4], index: 0, kind: input, shape index: {}]
  %s1 = inlined_call_operand.vmem [shape: f32[4,64], index: 1, kind: input, shape index: {}]
  %s2 = inlined_call_operand.vmem [shape: f32[1,64], index: 2, kind: input, shape index: {}]
  %s3 = inlined_call_operand.vmem [shape: f32[64,8], index: 3, kind: input, shape index: {}]
  %s4 = inlined_call_operand.vmem [shape: f32[1,8], index: 4, kind: input, shape index: {}]
  %s5 = inlined_call_operand.vmem [shape: f32[16,8], index: 5, kind: output, shape index: {}]
  %s6 = sld [smem:[#allocation0]]
  $region53: #{tpu_custom_call.1} parent=0
    _
  %s8 = ssub.s32 1, %s6
  %s9 = scalar_select 0, %s8, %s6
  loop: start=0, step=1, limit=4
  $region2: #{tpu_custom_call.1} parent=0 // loop_pre_header
    _
  $region3: #{tpu_custom_call.1} parent=0 // loop_header
    %s11 = sphi 0, %s15
    %p12 = scmp.ge.s32.totalorder %s11, 4
    %s21 = sphi 0, %s23
    %s24 = sphi 0, %s21
    %s25 = sphi 0, %s24
    %s41 = sphi 0, %s25
    %s45 = sphi 0, %s45
    %s47 = sphi 0, %s45
    %s48 = sphi 0, %s47
    %s62 = sphi 0, %s48
    %s66 = sphi 0, %s66
    %s68 = sphi 0, %s66
    %s69 = sphi 0, %s68
    %s83 = sphi 0, %s69
    %s87 = sphi 0, %s87
    %s89 = sphi 0, %s87
    %s90 = sphi 0, %s89
    %s104 = sphi 0, %s90
    %s108 = sphi 0, %s108
    %s110 = sphi 0, %s108
    %s111 = sphi 0, %s110
    %s125 = sphi 0, %s111
    %s131 = sphi 0, %s133
    %s134 = sphi 0, %s131
    %s135 = sphi 0, %s134
    %s151 = sphi 0, %s135
  $region4: #{tpu_custom_call.1} parent=0 // loop_header_branch
    %14 = sbr.rel (%p12) target = $region8
  $region5: #{tpu_custom_call.1} parent=0 // loop_body
    %s16 = ssub.s32 %s11, 1
    %s17 = ssub.s32 %s11, 2
    %s18 = sadd.s32 %s11, 1
    %s19 = ssub.s32 %s11, %s18
    %p20 = scmp.eq.s32.totalorder %s19, 0
    %s22 = sadd.s32 %s21, 1
    %s23 = scalar_select %p20, %s21, %s22
    %p26 = pneg %p20
    %p27 = scmp.eq.s32.totalorder %s11, 1
    %p28 = por %p26, %p27
    %p29 = scmp.ne.s32.totalorder %s21, %s24
    %p30 = scmp.eq.s32.totalorder %s11, 0
    %p31 = por %p29, %p30
    %p32 = scmp.ne.s32.totalorder %s21, %s24
    %p33 = scmp.eq.s32.totalorder %s16, 1
    %p34 = por %p32, %p33
    %p35 = scmp.ne.s32.totalorder %s24, %s25
    %p36 = scmp.eq.s32.totalorder %s16, 0
    %p37 = por %p35, %p36
    %p38 = scmp.ne.s32.totalorder %s24, %s25
    %p39 = scmp.eq.s32.totalorder %s17, 1
    %p40 = por %p38, %p39
    %p42 = scmp.ne.s32.totalorder %s25, %s41
    %p43 = scmp.eq.s32.totalorder %s17, 0
    %p44 = por %p42, %p43
    %s46 = sadd.s32 %s45, 1
    %p49 = scmp.eq.s32.totalorder %s11, 1
    %p50 = scmp.ne.s32.totalorder %s45, %s47
    %p51 = scmp.eq.s32.totalorder %s11, 0
    %p52 = por %p50, %p51
    %p53 = scmp.ne.s32.totalorder %s45, %s47
    %p54 = scmp.eq.s32.totalorder %s16, 1
    %p55 = por %p53, %p54
    %p56 = scmp.ne.s32.totalorder %s47, %s48
    %p57 = scmp.eq.s32.totalorder %s16, 0
    %p58 = por %p56, %p57
    %p59 = scmp.ne.s32.totalorder %s47, %s48
    %p60 = scmp.eq.s32.totalorder %s17, 1
    %p61 = por %p59, %p60
    %p63 = scmp.ne.s32.totalorder %s48, %s62
    %p64 = scmp.eq.s32.totalorder %s17, 0
    %p65 = por %p63, %p64
    %s67 = sadd.s32 %s66, 1
    %p70 = scmp.eq.s32.totalorder %s11, 1
    %p71 = scmp.ne.s32.totalorder %s66, %s68
    %p72 = scmp.eq.s32.totalorder %s11, 0
    %p73 = por %p71, %p72
    %p74 = scmp.ne.s32.totalorder %s66, %s68
    %p75 = scmp.eq.s32.totalorder %s16, 1
    %p76 = por %p74, %p75
    %p77 = scmp.ne.s32.totalorder %s68, %s69
    %p78 = scmp.eq.s32.totalorder %s16, 0
    %p79 = por %p77, %p78
    %p80 = scmp.ne.s32.totalorder %s68, %s69
    %p81 = scmp.eq.s32.totalorder %s17, 1
    %p82 = por %p80, %p81
    %p84 = scmp.ne.s32.totalorder %s69, %s83
    %p85 = scmp.eq.s32.totalorder %s17, 0
    %p86 = por %p84, %p85
    %s88 = sadd.s32 %s87, 1
    %p91 = scmp.eq.s32.totalorder %s11, 1
    %p92 = scmp.ne.s32.totalorder %s87, %s89
    %p93 = scmp.eq.s32.totalorder %s11, 0
    %p94 = por %p92, %p93
    %p95 = scmp.ne.s32.totalorder %s87, %s89
    %p96 = scmp.eq.s32.totalorder %s16, 1
    %p97 = por %p95, %p96
    %p98 = scmp.ne.s32.totalorder %s89, %s90
    %p99 = scmp.eq.s32.totalorder %s16, 0
    %p100 = por %p98, %p99
    %p101 = scmp.ne.s32.totalorder %s89, %s90
    %p102 = scmp.eq.s32.totalorder %s17, 1
    %p103 = por %p101, %p102
    %p105 = scmp.ne.s32.totalorder %s90, %s104
    %p106 = scmp.eq.s32.totalorder %s17, 0
    %p107 = por %p105, %p106
    %s109 = sadd.s32 %s108, 1
    %p112 = scmp.eq.s32.totalorder %s11, 1
    %p113 = scmp.ne.s32.totalorder %s108, %s110
    %p114 = scmp.eq.s32.totalorder %s11, 0
    %p115 = por %p113, %p114
    %p116 = scmp.ne.s32.totalorder %s108, %s110
    %p117 = scmp.eq.s32.totalorder %s16, 1
    %p118 = por %p116, %p117
    %p119 = scmp.ne.s32.totalorder %s110, %s111
    %p120 = scmp.eq.s32.totalorder %s16, 0
    %p121 = por %p119, %p120
    %p122 = scmp.ne.s32.totalorder %s110, %s111
    %p123 = scmp.eq.s32.totalorder %s17, 1
    %p124 = por %p122, %p123
    %p126 = scmp.ne.s32.totalorder %s111, %s125
    %p127 = scmp.eq.s32.totalorder %s17, 0
    %p128 = por %p126, %p127
    %s129 = ssub.s32 %s11, %s18
    %p130 = scmp.eq.s32.totalorder %s129, 0
    %s132 = sadd.s32 %s131, 1
    %s133 = scalar_select %p130, %s131, %s132
    %p136 = pneg %p130
    %p137 = scmp.eq.s32.totalorder %s11, 1
    %p138 = por %p136, %p137
    %p139 = scmp.ne.s32.totalorder %s131, %s134
    %p140 = scmp.eq.s32.totalorder %s11, 0
    %p141 = por %p139, %p140
    %p142 = scmp.ne.s32.totalorder %s131, %s134
    %p143 = scmp.eq.s32.totalorder %s16, 1
    %p144 = por %p142, %p143
    %p145 = scmp.ne.s32.totalorder %s134, %s135
    %p146 = scmp.eq.s32.totalorder %s16, 0
    %p147 = por %p145, %p146
    %p148 = scmp.ne.s32.totalorder %s134, %s135
    %p149 = scmp.eq.s32.totalorder %s17, 1
    %p150 = por %p148, %p149
    %p152 = scmp.ne.s32.totalorder %s135, %s151
    %p153 = scmp.eq.s32.totalorder %s17, 0
    %p154 = por %p152, %p153
    %p155 = scmp.le.s32.totalorder 1, %s11
    %p156 = scmp.lt.s32.totalorder %s11, 3
    %p157 = pnand %p155, %p156
    %p158 = pneg %p157
    // Predicated region
    $region9: #{tpu_custom_call.1} parent=5 // pred_check
      _
    $region10: #{tpu_custom_call.1} parent=5 // pred_check_branch
      %160 = sbr.rel (%p157) target = $region12
    $region11: #{tpu_custom_call.1} parent=5 // pred_region
      %s161 = ssub.s32 %s11, 1
      // Predicated region
      $region13: #{tpu_custom_call.1} parent=11 // pred_check
        %p162 = pneg %p58
      $region14: #{tpu_custom_call.1} parent=11 // pred_check_branch
        %164 = sbr.rel (%p162) target = $region16
      $region15: #{tpu_custom_call.1} parent=11 // pred_region
        _
      $region16: #{tpu_custom_call.1} parent=11 // pred_fallthru
        _
      // Predicated region
      $region17: #{tpu_custom_call.1} parent=11 // pred_check
        %p165 = pneg %p79
      $region18: #{tpu_custom_call.1} parent=11 // pred_check_branch
        %167 = sbr.rel (%p165) target = $region20
      $region19: #{tpu_custom_call.1} parent=11 // pred_region
        _
      $region20: #{tpu_custom_call.1} parent=11 // pred_fallthru
        _
      // Predicated region
      $region21: #{tpu_custom_call.1} parent=11 // pred_check
        %p168 = pneg %p100
      $region22: #{tpu_custom_call.1} parent=11 // pred_check_branch
        %170 = sbr.rel (%p168) target = $region24
      $region23: #{tpu_custom_call.1} parent=11 // pred_region
        _
      $region24: #{tpu_custom_call.1} parent=11 // pred_fallthru
        _
      // Predicated region
      $region25: #{tpu_custom_call.1} parent=11 // pred_check
        %p171 = pneg %p121
      $region26: #{tpu_custom_call.1} parent=11 // pred_check_branch
        %173 = sbr.rel (%p171) target = $region28
      $region27: #{tpu_custom_call.1} parent=11 // pred_region
        _
      $region28: #{tpu_custom_call.1} parent=11 // pred_fallthru
        _
    $region12: #{tpu_custom_call.1} parent=5 // pred_fallthru
      _
    %p174 = scmp.lt.s32.totalorder %s11, 2
    // Predicated region
    $region29: #{tpu_custom_call.1} parent=5 // pred_check
      %p175 = pneg %p174
    $region30: #{tpu_custom_call.1} parent=5 // pred_check_branch
      %177 = sbr.rel (%p175) target = $region32
    $region31: #{tpu_custom_call.1} parent=5 // pred_region
      // Predicated region
      $region33: #{tpu_custom_call.1} parent=31 // pred_check
        %p178 = pneg %p31
      $region34: #{tpu_custom_call.1} parent=31 // pred_check_branch
        %180 = sbr.rel (%p178) target = $region36
      $region35: #{tpu_custom_call.1} parent=31 // pred_region
        %p181 = scmp.lt.s32.totalorder %s11, 1
        %s182 = scalar_select %p181, %s11, 1
        %s183 = smul.addr %s182, 8
        %s184 = scalar_lea.vmem %s0, %s183
      $region36: #{tpu_custom_call.1} parent=31 // pred_fallthru
        _
    $region32: #{tpu_custom_call.1} parent=5 // pred_fallthru
      _
    %p185 = scmp.le.s32.totalorder 1, %s11
    %p186 = scmp.lt.s32.totalorder %s11, 3
    %p187 = pnand %p185, %p186
    %p188 = pneg %p187
    // Predicated region
    $region37: #{tpu_custom_call.1} parent=5 // pred_check
      _
    $region38: #{tpu_custom_call.1} parent=5 // pred_check_branch
      %190 = sbr.rel (%p187) target = $region40
    $region39: #{tpu_custom_call.1} parent=5 // pred_region
      %s191 = ssub.s32 %s11, 1
      %p192 = scmp.lt.s32.totalorder %s16, 1
      %s193 = scalar_select %p192, %s16, 1
      %s194 = smul.addr %s193, 8
      %s195 = scalar_lea.vmem %s0, %s194
      %p196 = pneg %p37
      %p197 = pneg %p34
      %p198 = pneg %p58
      %p199 = pneg %p55
      %p200 = pneg %p79
      %p201 = pneg %p76
      %p202 = pneg %p100
      %p203 = pneg %p97
      %p204 = pneg %p121
      %p205 = pneg %p118
      %p206 = pneg %p147
      %p207 = pneg %p144
      %p208 = scmp.lt.s32.totalorder %s16, 1
      %s209 = scalar_select %p208, %s16, 1
      %s210 = smul.addr %s209, 8
      %s211 = scalar_lea.vmem %s5, %s210
      %p212 = scmp.lt.s32.totalorder %s16, 1
      %s213 = scalar_select %p212, %s16, 1
      %s214 = smul.addr %s213, 8
      %s215 = scalar_lea.vmem %s0, %s214
      %p216 = scmp.lt.s32.totalorder %s16, 1
      %s217 = scalar_select %p216, %s16, 1
      %s218 = smul.addr %s217, 8
      %s219 = scalar_lea.vmem %s5, %s218
      %v220 = vld [vmem:[%s215] sm:$0xff]
      %v221 = vld [vmem:[%s1] sm:$0xf]
      %223 = vset.pattern.permute.xlu0 0
      %224 = vperm.xlu0 %223, %v220
      %v225 = vpop.permute.xlu0 %224
      %v227 = vperm.slane %v221, 0
      %v228 = vmul.f32 %v225, %v227
      %v229 = vld [vmem:[%s2] sm:$0x1]
      %v231 = vperm.slane %v229, 0
      %v233 = vadd.f32 %v228, %v231
      %234 = vset.pattern.permute.xlu0 1
      %235 = vperm.xlu0 %234, %v220
      %v236 = vpop.permute.xlu0 %235
      %v238 = vperm.slane %v221, 1
      %v239 = vmul.f32 %v236, %v238
      %v240 = vadd.f32 %v233, %v239
      %241 = vset.pattern.permute.xlu0 2
      %242 = vperm.xlu0 %241, %v220
      %v243 = vpop.permute.xlu0 %242
      %v245 = vperm.slane %v221, 2
      %v246 = vmul.f32 %v243, %v245
      %v247 = vadd.f32 %v240, %v246
      %248 = vset.pattern.permute.xlu0 3
      %249 = vperm.xlu0 %248, %v220
      %v250 = vpop.permute.xlu0 %249
      %v252 = vperm.slane %v221, 3
      %v253 = vmul.f32 %v250, %v252
      %v254 = vadd.f32 %v247, %v253
      %v255 = vmax.f32 %v254, 0.0
      %v256 = vld [vmem:[%s3] sm:$0xff]
      %v257 = vld [vmem:[%s3 + $0x8] sm:$0xff]
      %v258 = vld [vmem:[%s3 + $0x10] sm:$0xff]
      %v259 = vld [vmem:[%s3 + $0x18] sm:$0xff]
      %v260 = vld [vmem:[%s3 + $0x20] sm:$0xff]
      %v261 = vld [vmem:[%s3 + $0x28] sm:$0xff]
      %v262 = vld [vmem:[%s3 + $0x30] sm:$0xff]
      %v263 = vld [vmem:[%s3 + $0x38] sm:$0xff]
      %v264 = vld [vmem:[%s4] sm:$0x1]
      %v266 = vperm.slane %v264, 0
      %vm268 = vcmask 523264
      %v270 = vsel %vm268, %v255, 0
      %272 = vmatpush.msra.mxu0 0.0
      %273 = vmatpush.msra.mxu0 0.0
      %274 = vmatpush.msra.mxu0 0.0
      %275 = vmatpush.msra.mxu0 0.0
      %276 = vmatpush.msra.mxu0 0.0
      %277 = vmatpush.msra.mxu0 0.0
      %278 = vmatpush.msra.mxu0 0.0
      %279 = vmatpush.msra.mxu0 0.0
      %280 = vmatpush.msra.mxu0 %v263
      %281 = vmatpush.msra.mxu0 %v262
      %282 = vmatpush.msra.mxu0 %v261
      %283 = vmatpush.msra.mxu0 %v260
      %284 = vmatpush.msra.mxu0 %v259
      %285 = vmatpush.msra.mxu0 %v258
      %286 = vmatpush.msra.mxu0 %v257
      %287 = vmatpush.msra.mxu0 %v256
      %288 = vmatmul.f32.gmra.mxu0 %v270
      %v289 = vpop.f32.mrf.mxu0
      %v290 = vadd.f32 %v266, %v289
      %291 = vdwg.mxu0
      %vm292 = vcmask 64512
      %293 = vst.msk [vmem:[%s219] sm:$0xff] %vm292, %v290
      %p294 = scmp.lt.s32.totalorder %s16, 1
      %s295 = scalar_select %p294, %s16, 1
      %s296 = smul.addr %s295, 8
      %s297 = scalar_lea.vmem %s5, %s296
      // Predicated region
      $region41: #{tpu_custom_call.1} parent=39 // pred_check
        %p298 = pneg %p144
      $region42: #{tpu_custom_call.1} parent=39 // pred_check_branch
        %300 = sbr.rel (%p298) target = $region44
      $region43: #{tpu_custom_call.1} parent=39 // pred_region
        _
      $region44: #{tpu_custom_call.1} parent=39 // pred_fallthru
        _
    $region40: #{tpu_custom_call.1} parent=5 // pred_fallthru
      _
    %p301 = scmp.le.s32.totalorder 2, %s11
    // Predicated region
    $region45: #{tpu_custom_call.1} parent=5 // pred_check
      %p302 = pneg %p301
    $region46: #{tpu_custom_call.1} parent=5 // pred_check_branch
      %304 = sbr.rel (%p302) target = $region48
    $region47: #{tpu_custom_call.1} parent=5 // pred_region
      %s305 = ssub.s32 %s11, 2
      // Predicated region
      $region49: #{tpu_custom_call.1} parent=47 // pred_check
        %p306 = pneg %p150
      $region50: #{tpu_custom_call.1} parent=47 // pred_check_branch
        %308 = sbr.rel (%p306) target = $region52
      $region51: #{tpu_custom_call.1} parent=47 // pred_region
        %p309 = scmp.lt.s32.totalorder %s17, 1
        %s310 = scalar_select %p309, %s17, 1
        %s311 = smul.addr %s310, 8
        %s312 = scalar_lea.vmem %s5, %s311
      $region52: #{tpu_custom_call.1} parent=47 // pred_fallthru
        _
    $region48: #{tpu_custom_call.1} parent=5 // pred_fallthru
      _
  $region6: #{tpu_custom_call.1} parent=0 // loop_footer
    %s15 = sadd.s32 1, %s11
  $region7: #{tpu_custom_call.1} parent=0 // loop_footer_branch
    %10 = sbr.rel target = $region3
  $region8: #{tpu_custom_call.1} parent=0 // loop_exit
    _

</llo_original>
